<compile_context>
chip_gen: v5e
topology: v5e:2x2
jax: 0.10.0
libtpu: 0.0.40
codegen_flags: <defaults>
</compile_context>

<pallas_src>
import functools

import jax
import jax.numpy as jnp
from jax.experimental import pallas as pl
from jax.experimental.pallas import tpu as pltpu


def _round_up(n, m):
    return ((n + m - 1) // m) * m


def _projection_head_kernel(x_ref, w1_ref, b1_ref, w2_ref, b2_ref, o_ref):
    """Fused: Linear1(+folded BN) -> ReLU -> (Dropout=id) -> Linear2.

    x_ref, w1_ref, w2_ref are bf16 (MXU operands); accumulation and the
    elementwise epilogue are f32.
    """
    # Linear 1 with BatchNorm folded into the weights/bias (MXU, f32 accumulate).
    h = jnp.dot(x_ref[...], w1_ref[...], preferred_element_type=jnp.float32)
    h = h + b1_ref[...]

    # ReLU in f32 (VPU); Dropout is identity at inference.
    h = jnp.maximum(h, 0.0)

    # Linear 2: cast activations to bf16 only for the MXU operand.
    y = jnp.dot(h.astype(jnp.bfloat16), w2_ref[...],
                preferred_element_type=jnp.float32)
    o_ref[...] = (y + b2_ref[...]).astype(o_ref.dtype)


@functools.partial(jax.jit, static_argnames=("tile_b",))
def projection_head_forward(x, w1, b1, bn_scale, bn_shift, w2, b2, *, tile_b=512):
    B, Din = x.shape
    Dout = w1.shape[1]

    # Fold BatchNorm1d (eval mode) into Linear1: (x@w1 + b1)*s + t == x@(w1*s) + (b1*s + t).
    w1f = (w1 * bn_scale).astype(jnp.bfloat16)              # (Din, Dout)
    b1f = (b1 * bn_scale + bn_shift).astype(jnp.float32)    # (1, Dout)
    w2b = w2.astype(jnp.bfloat16)                           # (Dout, Dout)
    b2f = b2.astype(jnp.float32)                            # (1, Dout)

    # bf16 activations on the MXU; also halves HBM traffic for the x stream.
    xb = x.astype(jnp.bfloat16)

    # Batch tile: large to amortize per-grid-step overhead, multiple of 16 (bf16 sublane
    # packing), capped so small batches still produce a valid block. Pad batch up to a
    # multiple of the tile; padded rows are garbage-in/garbage-out and sliced off below.
    tb = max(16, min(tile_b, _round_up(B, 16)))
    Bp = _round_up(B, tb)
    if Bp != B:
        xb = jnp.pad(xb, ((0, Bp - B), (0, 0)))

    grid = (Bp // tb,)

    flops = 2 * 2 * Bp * Din * Dout            # two matmuls
    bytes_accessed = (Bp * Din * 2             # x (bf16)
                      + Bp * Dout * 4          # out (f32)
                      + (Din * Dout + Dout * Dout) * 2   # weights (bf16)
                      + 2 * Dout * 4)          # biases (f32)

    out = pl.pallas_call(
        _projection_head_kernel,
        out_shape=jax.ShapeDtypeStruct((Bp, Dout), x.dtype),
        grid_spec=pltpu.PrefetchScalarGridSpec(
            num_scalar_prefetch=0,
            grid=grid,
            in_specs=[
                pl.BlockSpec((tb, Din), lambda i: (i, 0)),     # x tile (streamed)
                pl.BlockSpec((Din, Dout), lambda i: (0, 0)),   # W1 (BN-folded, resident)
                pl.BlockSpec((1, Dout), lambda i: (0, 0)),     # b1 (BN-folded)
                pl.BlockSpec((Dout, Dout), lambda i: (0, 0)),  # W2 (resident)
                pl.BlockSpec((1, Dout), lambda i: (0, 0)),     # b2
            ],
            out_specs=pl.BlockSpec((tb, Dout), lambda i: (i, 0)),
        ),
        compiler_params=pltpu.CompilerParams(
            dimension_semantics=("parallel",)),
        cost_estimate=pl.CostEstimate(
            flops=flops, transcendentals=0, bytes_accessed=bytes_accessed),
    )(xb, w1f, b1f, w2b, b2f)

    return out[:B] if Bp != B else out


def make_params(key, input_dim=128, output_dim=128, dtype=jnp.float32):
    """Deterministic synthetic parameters matching the module's __init__ shapes."""
    ks = jax.random.split(key, 8)
    s1 = 1.0 / jnp.sqrt(input_dim)
    s2 = 1.0 / jnp.sqrt(output_dim)
    w1 = jax.random.uniform(ks[0], (input_dim, output_dim), dtype, -s1, s1)
    b1 = jax.random.uniform(ks[1], (1, output_dim), dtype, -s1, s1)
    w2 = jax.random.uniform(ks[2], (output_dim, output_dim), dtype, -s2, s2)
    b2 = jax.random.uniform(ks[3], (1, output_dim), dtype, -s2, s2)
    # BatchNorm1d(output_dim): gamma, beta, running_mean, running_var (eval mode)
    gamma = 1.0 + 0.1 * jax.random.normal(ks[4], (1, output_dim), dtype)
    beta = 0.1 * jax.random.normal(ks[5], (1, output_dim), dtype)
    running_mean = 0.1 * jax.random.normal(ks[6], (1, output_dim), dtype)
    running_var = jnp.abs(1.0 + 0.1 * jax.random.normal(ks[7], (1, output_dim), dtype))
    eps = 1e-5
    bn_scale = gamma / jnp.sqrt(running_var + eps)
    bn_shift = beta - running_mean * bn_scale
    return w1, b1, bn_scale, bn_shift, w2, b2


def reference_forward_bf16(x, w1, b1, bn_scale, bn_shift, w2, b2):
    """Reference with the same BN fold and bf16 operand quantization as the kernel."""
    w1f = (w1 * bn_scale).astype(jnp.bfloat16).astype(jnp.float32)
    b1f = b1 * bn_scale + bn_shift
    xq = x.astype(jnp.bfloat16).astype(jnp.float32)
    h = xq @ w1f + b1f
    h = jnp.maximum(h, 0.0)  # Dropout = identity at inference
    hq = h.astype(jnp.bfloat16).astype(jnp.float32)
    w2q = w2.astype(jnp.bfloat16).astype(jnp.float32)
    return hq @ w2q + b2


if __name__ == "__main__":
    key = jax.random.PRNGKey(0)
    kx, kp = jax.random.split(key)

    # Module defaults: input_dim = output_dim = 128. Small batch (24) deliberately
    # non-divisible by the tile to exercise the pad-and-slice path and a 2-step grid.
    B, Din, Dout = 24, 128, 128
    x = jax.random.normal(kx, (B, Din), jnp.float32)
    params = make_params(kp, Din, Dout)

    out = projection_head_forward(x, *params, tile_b=16)
    out = jax.block_until_ready(out)

    ref = reference_forward_bf16(x, *params)
    assert out.shape == (B, Dout)
    assert jnp.allclose(out, ref, atol=1e-2, rtol=1e-2), "mismatch vs reference"

    print("KERNEL_OK")
</pallas_src>

<mosaic_0001>
module attributes {stable_mosaic.version = 11 : i64} {
  func.func @_projection_head_kernel(%arg0: i32, %arg1: memref<16x128xbf16, #tpu.memory_space<vmem>>, %arg2: memref<128x128xbf16, #tpu.memory_space<vmem>>, %arg3: memref<1x128xf32, #tpu.memory_space<vmem>>, %arg4: memref<128x128xbf16, #tpu.memory_space<vmem>>, %arg5: memref<1x128xf32, #tpu.memory_space<vmem>>, %arg6: memref<16x128xf32, #tpu.memory_space<vmem>>) attributes {dimension_semantics = [#tpu.dimension_semantics<parallel>], iteration_bounds = array<i64: 2>, scalar_prefetch = 0 : i64, scratch_operands = 0 : i64, tpu.core_type = #tpu.core_type<tc>, window_params = [{transform_indices = @transform_0, window_bounds = array<i64: 16, 128>}, {pipeline_mode = #tpu.pipeline_mode<synchronous>, transform_indices = @transform_1, window_bounds = array<i64: 128, 128>}, {pipeline_mode = #tpu.pipeline_mode<synchronous>, transform_indices = @transform_2, window_bounds = array<i64: 1, 128>}, {pipeline_mode = #tpu.pipeline_mode<synchronous>, transform_indices = @transform_3, window_bounds = array<i64: 128, 128>}, {pipeline_mode = #tpu.pipeline_mode<synchronous>, transform_indices = @transform_4, window_bounds = array<i64: 1, 128>}, {transform_indices = @transform_5, window_bounds = array<i64: 16, 128>}]} {
    %c0 = arith.constant 0 : index
    %c0_0 = arith.constant 0 : index
    %0 = vector.load %arg1[%c0, %c0_0] : memref<16x128xbf16, #tpu.memory_space<vmem>>, vector<16x128xbf16>
    %c0_1 = arith.constant 0 : index
    %c0_2 = arith.constant 0 : index
    %1 = vector.load %arg2[%c0_1, %c0_2] : memref<128x128xbf16, #tpu.memory_space<vmem>>, vector<128x128xbf16>
    %cst = arith.constant dense<0.000000e+00> : vector<16x128xf32>
    %2 = tpu.matmul %0, %1, %cst {dimension_numbers = #tpu.dot_dimension_numbers<[1], [0], [0], [1], [0, 0, 1, 1], [], []>} : vector<16x128xbf16>, vector<128x128xbf16>, vector<16x128xf32> -> vector<16x128xf32>
    %c0_3 = arith.constant 0 : index
    %c0_4 = arith.constant 0 : index
    %3 = vector.load %arg3[%c0_3, %c0_4] : memref<1x128xf32, #tpu.memory_space<vmem>>, vector<1x128xf32>
    %4 = vector.broadcast %3 : vector<1x128xf32> to vector<16x128xf32>
    %5 = arith.addf %2, %4 : vector<16x128xf32>
    %cst_5 = arith.constant 0.000000e+00 : f32
    %6 = vector.broadcast %cst_5 : f32 to vector<16x128xf32>
    %7 = arith.maximumf %5, %6 : vector<16x128xf32>
    %8 = arith.truncf %7 : vector<16x128xf32> to vector<16x128xbf16>
    %c0_6 = arith.constant 0 : index
    %c0_7 = arith.constant 0 : index
    %9 = vector.load %arg4[%c0_6, %c0_7] : memref<128x128xbf16, #tpu.memory_space<vmem>>, vector<128x128xbf16>
    %cst_8 = arith.constant dense<0.000000e+00> : vector<16x128xf32>
    %10 = tpu.matmul %8, %9, %cst_8 {dimension_numbers = #tpu.dot_dimension_numbers<[1], [0], [0], [1], [0, 0, 1, 1], [], []>} : vector<16x128xbf16>, vector<128x128xbf16>, vector<16x128xf32> -> vector<16x128xf32>
    %c0_9 = arith.constant 0 : index
    %c0_10 = arith.constant 0 : index
    %11 = vector.load %arg5[%c0_9, %c0_10] : memref<1x128xf32, #tpu.memory_space<vmem>>, vector<1x128xf32>
    %12 = vector.broadcast %11 : vector<1x128xf32> to vector<16x128xf32>
    %13 = arith.addf %10, %12 : vector<16x128xf32>
    %c0_11 = arith.constant 0 : index
    %c0_12 = arith.constant 0 : index
    %14 = vector.load %arg6[%c0_11, %c0_12] : memref<16x128xf32, #tpu.memory_space<vmem>>, vector<16x128xf32>
    tpu.vector_store %arg6[%c0_11, %c0_12], %13 {strides = array<i32>} : memref<16x128xf32, #tpu.memory_space<vmem>>, vector<16x128xf32>,
    return
  }
  func.func @transform_0(%arg0: i32) -> (i32, i32) {
    %c0_i32 = arith.constant 0 : i32
    %c0_i32_0 = arith.constant 0 : i32
    return %arg0, %c0_i32 : i32, i32
  }
  func.func @transform_1(%arg0: i32) -> (i32, i32) {
    %c0_i32 = arith.constant 0 : i32
    %c0_i32_0 = arith.constant 0 : i32
    %c0_i32_1 = arith.constant 0 : i32
    return %c0_i32, %c0_i32_0 : i32, i32
  }
  func.func @transform_2(%arg0: i32) -> (i32, i32) {
    %c0_i32 = arith.constant 0 : i32
    %c0_i32_0 = arith.constant 0 : i32
    %c0_i32_1 = arith.constant 0 : i32
    return %c0_i32, %c0_i32_0 : i32, i32
  }
  func.func @transform_3(%arg0: i32) -> (i32, i32) {
    %c0_i32 = arith.constant 0 : i32
    %c0_i32_0 = arith.constant 0 : i32
    %c0_i32_1 = arith.constant 0 : i32
    return %c0_i32, %c0_i32_0 : i32, i32
  }
  func.func @transform_4(%arg0: i32) -> (i32, i32) {
    %c0_i32 = arith.constant 0 : i32
    %c0_i32_0 = arith.constant 0 : i32
    %c0_i32_1 = arith.constant 0 : i32
    return %c0_i32, %c0_i32_0 : i32, i32
  }
  func.func @transform_5(%arg0: i32) -> (i32, i32) {
    %c0_i32 = arith.constant 0 : i32
    %c0_i32_0 = arith.constant 0 : i32
    return %arg0, %c0_i32 : i32, i32
  }
}

</mosaic_0001>

<llo_original>
// kernel: projection_head_forward.1
$region0: #{projection_head_forward.1}
  #allocation0 [shape = 'u32[]', space=smem, size = 0x4, offset = 0x4, fixed_abs, tag = 'smem constant byte address 0x4 - core index']
  #allocation1 [shape = 'u32[72,128]{1,0:T(1,128)}', space=vmem, size = 0x9000, scoped, tag = 'internal scratch']
  %s0 = inlined_call_operand.vmem [shape: bf16[32,128], index: 0, kind: input, shape index: {}]
  %s1 = inlined_call_operand.vmem [shape: bf16[128,128], index: 1, kind: input, shape index: {}]
  %s2 = inlined_call_operand.vmem [shape: f32[1,128], index: 2, kind: input, shape index: {}]
  %s3 = inlined_call_operand.vmem [shape: bf16[128,128], index: 3, kind: input, shape index: {}]
  %s4 = inlined_call_operand.vmem [shape: f32[1,128], index: 4, kind: input, shape index: {}]
  %s5 = inlined_call_operand.vmem [shape: f32[32,128], index: 5, kind: output, shape index: {}]
  %s6 = sld [smem:[#allocation0]]
  $region53: #{projection_head_forward.1} parent=0
    _
  %s8 = ssub.s32 1, %s6
  %s9 = scalar_select 0, %s8, %s6
  loop: start=0, step=1, limit=4
  $region2: #{projection_head_forward.1} parent=0 // loop_pre_header
    _
  $region3: #{projection_head_forward.1} parent=0 // loop_header
    %s11 = sphi 0, %s15
    %p12 = scmp.ge.s32.totalorder %s11, 4
    %s21 = sphi 0, %s23
    %s24 = sphi 0, %s21
    %s25 = sphi 0, %s24
    %s41 = sphi 0, %s25
    %s45 = sphi 0, %s45
    %s47 = sphi 0, %s45
    %s48 = sphi 0, %s47
    %s62 = sphi 0, %s48
    %s66 = sphi 0, %s66
    %s68 = sphi 0, %s66
    %s69 = sphi 0, %s68
    %s83 = sphi 0, %s69
    %s87 = sphi 0, %s87
    %s89 = sphi 0, %s87
    %s90 = sphi 0, %s89
    %s104 = sphi 0, %s90
    %s108 = sphi 0, %s108
    %s110 = sphi 0, %s108
    %s111 = sphi 0, %s110
    %s125 = sphi 0, %s111
    %s131 = sphi 0, %s133
    %s134 = sphi 0, %s131
    %s135 = sphi 0, %s134
    %s151 = sphi 0, %s135
  $region4: #{projection_head_forward.1} parent=0 // loop_header_branch
    %14 = sbr.rel (%p12) target = $region8
  $region5: #{projection_head_forward.1} parent=0 // loop_body
    %s16 = ssub.s32 %s11, 1
    %s17 = ssub.s32 %s11, 2
    %s18 = sadd.s32 %s11, 1
    %s19 = ssub.s32 %s11, %s18
    %p20 = scmp.eq.s32.totalorder %s19, 0
    %s22 = sadd.s32 %s21, 1
    %s23 = scalar_select %p20, %s21, %s22
    %p26 = pneg %p20
    %p27 = scmp.eq.s32.totalorder %s11, 1
    %p28 = por %p26, %p27
    %p29 = scmp.ne.s32.totalorder %s21, %s24
    %p30 = scmp.eq.s32.totalorder %s11, 0
    %p31 = por %p29, %p30
    %p32 = scmp.ne.s32.totalorder %s21, %s24
    %p33 = scmp.eq.s32.totalorder %s16, 1
    %p34 = por %p32, %p33
    %p35 = scmp.ne.s32.totalorder %s24, %s25
    %p36 = scmp.eq.s32.totalorder %s16, 0
    %p37 = por %p35, %p36
    %p38 = scmp.ne.s32.totalorder %s24, %s25
    %p39 = scmp.eq.s32.totalorder %s17, 1
    %p40 = por %p38, %p39
    %p42 = scmp.ne.s32.totalorder %s25, %s41
    %p43 = scmp.eq.s32.totalorder %s17, 0
    %p44 = por %p42, %p43
    %s46 = sadd.s32 %s45, 1
    %p49 = scmp.eq.s32.totalorder %s11, 1
    %p50 = scmp.ne.s32.totalorder %s45, %s47
    %p51 = scmp.eq.s32.totalorder %s11, 0
    %p52 = por %p50, %p51
    %p53 = scmp.ne.s32.totalorder %s45, %s47
    %p54 = scmp.eq.s32.totalorder %s16, 1
    %p55 = por %p53, %p54
    %p56 = scmp.ne.s32.totalorder %s47, %s48
    %p57 = scmp.eq.s32.totalorder %s16, 0
    %p58 = por %p56, %p57
    %p59 = scmp.ne.s32.totalorder %s47, %s48
    %p60 = scmp.eq.s32.totalorder %s17, 1
    %p61 = por %p59, %p60
    %p63 = scmp.ne.s32.totalorder %s48, %s62
    %p64 = scmp.eq.s32.totalorder %s17, 0
    %p65 = por %p63, %p64
    %s67 = sadd.s32 %s66, 1
    %p70 = scmp.eq.s32.totalorder %s11, 1
    %p71 = scmp.ne.s32.totalorder %s66, %s68
    %p72 = scmp.eq.s32.totalorder %s11, 0
    %p73 = por %p71, %p72
    %p74 = scmp.ne.s32.totalorder %s66, %s68
    %p75 = scmp.eq.s32.totalorder %s16, 1
    %p76 = por %p74, %p75
    %p77 = scmp.ne.s32.totalorder %s68, %s69
    %p78 = scmp.eq.s32.totalorder %s16, 0
    %p79 = por %p77, %p78
    %p80 = scmp.ne.s32.totalorder %s68, %s69
    %p81 = scmp.eq.s32.totalorder %s17, 1
    %p82 = por %p80, %p81
    %p84 = scmp.ne.s32.totalorder %s69, %s83
    %p85 = scmp.eq.s32.totalorder %s17, 0
    %p86 = por %p84, %p85
    %s88 = sadd.s32 %s87, 1
    %p91 = scmp.eq.s32.totalorder %s11, 1
    %p92 = scmp.ne.s32.totalorder %s87, %s89
    %p93 = scmp.eq.s32.totalorder %s11, 0
    %p94 = por %p92, %p93
    %p95 = scmp.ne.s32.totalorder %s87, %s89
    %p96 = scmp.eq.s32.totalorder %s16, 1
    %p97 = por %p95, %p96
    %p98 = scmp.ne.s32.totalorder %s89, %s90
    %p99 = scmp.eq.s32.totalorder %s16, 0
    %p100 = por %p98, %p99
    %p101 = scmp.ne.s32.totalorder %s89, %s90
    %p102 = scmp.eq.s32.totalorder %s17, 1
    %p103 = por %p101, %p102
    %p105 = scmp.ne.s32.totalorder %s90, %s104
    %p106 = scmp.eq.s32.totalorder %s17, 0
    %p107 = por %p105, %p106
    %s109 = sadd.s32 %s108, 1
    %p112 = scmp.eq.s32.totalorder %s11, 1
    %p113 = scmp.ne.s32.totalorder %s108, %s110
    %p114 = scmp.eq.s32.totalorder %s11, 0
    %p115 = por %p113, %p114
    %p116 = scmp.ne.s32.totalorder %s108, %s110
    %p117 = scmp.eq.s32.totalorder %s16, 1
    %p118 = por %p116, %p117
    %p119 = scmp.ne.s32.totalorder %s110, %s111
    %p120 = scmp.eq.s32.totalorder %s16, 0
    %p121 = por %p119, %p120
    %p122 = scmp.ne.s32.totalorder %s110, %s111
    %p123 = scmp.eq.s32.totalorder %s17, 1
    %p124 = por %p122, %p123
    %p126 = scmp.ne.s32.totalorder %s111, %s125
    %p127 = scmp.eq.s32.totalorder %s17, 0
    %p128 = por %p126, %p127
    %s129 = ssub.s32 %s11, %s18
    %p130 = scmp.eq.s32.totalorder %s129, 0
    %s132 = sadd.s32 %s131, 1
    %s133 = scalar_select %p130, %s131, %s132
    %p136 = pneg %p130
    %p137 = scmp.eq.s32.totalorder %s11, 1
    %p138 = por %p136, %p137
    %p139 = scmp.ne.s32.totalorder %s131, %s134
    %p140 = scmp.eq.s32.totalorder %s11, 0
    %p141 = por %p139, %p140
    %p142 = scmp.ne.s32.totalorder %s131, %s134
    %p143 = scmp.eq.s32.totalorder %s16, 1
    %p144 = por %p142, %p143
    %p145 = scmp.ne.s32.totalorder %s134, %s135
    %p146 = scmp.eq.s32.totalorder %s16, 0
    %p147 = por %p145, %p146
    %p148 = scmp.ne.s32.totalorder %s134, %s135
    %p149 = scmp.eq.s32.totalorder %s17, 1
    %p150 = por %p148, %p149
    %p152 = scmp.ne.s32.totalorder %s135, %s151
    %p153 = scmp.eq.s32.totalorder %s17, 0
    %p154 = por %p152, %p153
    %p155 = scmp.le.s32.totalorder 1, %s11
    %p156 = scmp.lt.s32.totalorder %s11, 3
    %p157 = pnand %p155, %p156
    %p158 = pneg %p157
    // Predicated region
    $region9: #{projection_head_forward.1} parent=5 // pred_check
      _
    $region10: #{projection_head_forward.1} parent=5 // pred_check_branch
      %160 = sbr.rel (%p157) target = $region12
    $region11: #{projection_head_forward.1} parent=5 // pred_region
      %s161 = ssub.s32 %s11, 1
      // Predicated region
      $region13: #{projection_head_forward.1} parent=11 // pred_check
        %p162 = pneg %p58
      $region14: #{projection_head_forward.1} parent=11 // pred_check_branch
        %164 = sbr.rel (%p162) target = $region16
      $region15: #{projection_head_forward.1} parent=11 // pred_region
        _
      $region16: #{projection_head_forward.1} parent=11 // pred_fallthru
        _
      // Predicated region
      $region17: #{projection_head_forward.1} parent=11 // pred_check
        %p165 = pneg %p79
      $region18: #{projection_head_forward.1} parent=11 // pred_check_branch
        %167 = sbr.rel (%p165) target = $region20
      $region19: #{projection_head_forward.1} parent=11 // pred_region
        _
      $region20: #{projection_head_forward.1} parent=11 // pred_fallthru
        _
      // Predicated region
      $region21: #{projection_head_forward.1} parent=11 // pred_check
        %p168 = pneg %p100
      $region22: #{projection_head_forward.1} parent=11 // pred_check_branch
        %170 = sbr.rel (%p168) target = $region24
      $region23: #{projection_head_forward.1} parent=11 // pred_region
        _
      $region24: #{projection_head_forward.1} parent=11 // pred_fallthru
        _
      // Predicated region
      $region25: #{projection_head_forward.1} parent=11 // pred_check
        %p171 = pneg %p121
      $region26: #{projection_head_forward.1} parent=11 // pred_check_branch
        %173 = sbr.rel (%p171) target = $region28
      $region27: #{projection_head_forward.1} parent=11 // pred_region
        _
      $region28: #{projection_head_forward.1} parent=11 // pred_fallthru
        _
    $region12: #{projection_head_forward.1} parent=5 // pred_fallthru
      _
    %p174 = scmp.lt.s32.totalorder %s11, 2
    // Predicated region
    $region29: #{projection_head_forward.1} parent=5 // pred_check
      %p175 = pneg %p174
    $region30: #{projection_head_forward.1} parent=5 // pred_check_branch
      %177 = sbr.rel (%p175) target = $region32
    $region31: #{projection_head_forward.1} parent=5 // pred_region
      // Predicated region
      $region33: #{projection_head_forward.1} parent=31 // pred_check
        %p178 = pneg %p31
      $region34: #{projection_head_forward.1} parent=31 // pred_check_branch
        %180 = sbr.rel (%p178) target = $region36
      $region35: #{projection_head_forward.1} parent=31 // pred_region
        %s181 = smul.u32 2, %s11
        %p182 = scmp.lt.s32.totalorder %s181, 3
        %s183 = scalar_select %p182, %s181, 3
        %s184 = smul.addr %s183, 4
        %s185 = scalar_lea.vmem %s0, %s184
        %s186 = smul.u32 2, %s11
      $region36: #{projection_head_forward.1} parent=31 // pred_fallthru
        _
    $region32: #{projection_head_forward.1} parent=5 // pred_fallthru
      _
    %p187 = scmp.le.s32.totalorder 1, %s11
    %p188 = scmp.lt.s32.totalorder %s11, 3
    %p189 = pnand %p187, %p188
    %p190 = pneg %p189
    // Predicated region
    $region37: #{projection_head_forward.1} parent=5 // pred_check
      _
    $region38: #{projection_head_forward.1} parent=5 // pred_check_branch
      %192 = sbr.rel (%p189) target = $region40
    $region39: #{projection_head_forward.1} parent=5 // pred_region
      %s193 = ssub.s32 %s11, 1
      %s194 = smul.u32 2, %s16
      %p195 = scmp.lt.s32.totalorder %s194, 3
      %s196 = scalar_select %p195, %s194, 3
      %s197 = smul.addr %s196, 4
      %s198 = scalar_lea.vmem %s0, %s197
      %p199 = pneg %p37
      %p200 = pneg %p34
      %p201 = pneg %p58
      %p202 = pneg %p55
      %p203 = pneg %p79
      %p204 = pneg %p76
      %p205 = pneg %p100
      %p206 = pneg %p97
      %p207 = pneg %p121
      %p208 = pneg %p118
      %p209 = pneg %p147
      %p210 = pneg %p144
      %s211 = smul.u32 2, %s16
      %p212 = scmp.lt.s32.totalorder %s211, 3
      %s213 = scalar_select %p212, %s211, 3
      %s214 = smul.addr %s213, 8
      %s215 = scalar_lea.vmem %s5, %s214
      %s216 = smul.u32 2, %s16
      %p217 = scmp.lt.s32.totalorder %s216, 3
      %s218 = scalar_select %p217, %s216, 3
      %s219 = smul.addr %s218, 4
      %s220 = scalar_lea.vmem %s0, %s219
      %s221 = smul.u32 2, %s16
      %s222 = smul.u32 2, %s16
      %p223 = scmp.lt.s32.totalorder %s222, 3
      %s224 = scalar_select %p223, %s222, 3
      %s225 = smul.addr %s224, 8
      %s226 = scalar_lea.vmem %s5, %s225
      %s227 = smul.u32 2, %s16
      %v228 = vld [vmem:[%s220] sm:$0xf]
      %v229 = vld [vmem:[%s220 + $0x4] sm:$0xf]
      %v230 = vld [vmem:[%s1] sm:$0xf]
      %v231 = vld [vmem:[%s1 + $0x4] sm:$0xf]
      %v232 = vld [vmem:[%s1 + $0x8] sm:$0xf]
      %v233 = vld [vmem:[%s1 + $0xc] sm:$0xf]
      %v234 = vld [vmem:[%s1 + $0x10] sm:$0xf]
      %v235 = vld [vmem:[%s1 + $0x14] sm:$0xf]
      %v236 = vld [vmem:[%s1 + $0x18] sm:$0xf]
      %v237 = vld [vmem:[%s1 + $0x1c] sm:$0xf]
      %v238 = vld [vmem:[%s1 + $0x20] sm:$0xf]
      %v239 = vld [vmem:[%s1 + $0x24] sm:$0xf]
      %v240 = vld [vmem:[%s1 + $0x28] sm:$0xf]
      %v241 = vld [vmem:[%s1 + $0x2c] sm:$0xf]
      %v242 = vld [vmem:[%s1 + $0x30] sm:$0xf]
      %v243 = vld [vmem:[%s1 + $0x34] sm:$0xf]
      %v244 = vld [vmem:[%s1 + $0x38] sm:$0xf]
      %v245 = vld [vmem:[%s1 + $0x3c] sm:$0xf]
      %v246 = vld [vmem:[%s2] sm:$0x1]
      %v248 = vperm.slane %v246, 0
      %v252 = vunpack.c.l.b16 %v228
      %v253 = vunpack.c.l.b16 %v229
      %v254 = vpack.c.b16 %v253, %v252
      %v272 = vunpack.c.l.b16 %v230
      %v273 = vunpack.c.l.b16 %v231
      %v274 = vunpack.c.l.b16 %v232
      %v275 = vunpack.c.l.b16 %v233
      %v276 = vunpack.c.l.b16 %v234
      %v277 = vunpack.c.l.b16 %v235
      %v278 = vunpack.c.l.b16 %v236
      %v279 = vunpack.c.l.b16 %v237
      %v280 = vunpack.c.l.b16 %v238
      %v281 = vunpack.c.l.b16 %v239
      %v282 = vunpack.c.l.b16 %v240
      %v283 = vunpack.c.l.b16 %v241
      %v284 = vunpack.c.l.b16 %v242
      %v285 = vunpack.c.l.b16 %v243
      %v286 = vunpack.c.l.b16 %v244
      %v287 = vunpack.c.l.b16 %v245
      %v288 = vpack.c.b16 %v273, %v272
      %v289 = vpack.c.b16 %v275, %v274
      %v290 = vpack.c.b16 %v277, %v276
      %v291 = vpack.c.b16 %v279, %v278
      %v292 = vpack.c.b16 %v281, %v280
      %v293 = vpack.c.b16 %v283, %v282
      %v294 = vpack.c.b16 %v285, %v284
      %v295 = vpack.c.b16 %v287, %v286
      %304 = vmatpush.bf16.msra.mxu0 %v295
      %305 = vmatpush.bf16.msra.mxu0 %v294
      %306 = vmatpush.bf16.msra.mxu0 %v293
      %307 = vmatpush.bf16.msra.mxu0 %v292
      %308 = vmatpush.bf16.msra.mxu0 %v291
      %309 = vmatpush.bf16.msra.mxu0 %v290
      %310 = vmatpush.bf16.msra.mxu0 %v289
      %311 = vmatpush.bf16.msra.mxu0 %v288
      %312 = vmatmul.bf16.gmra.mxu0 %v254
      %v313 = vpop.f32.mrf.mxu0
      %v314 = vadd.f32 %v248, %v313
      %v315 = vpop.f32.mrf.mxu0
      %v316 = vadd.f32 %v248, %v315
      %317 = vdwg.mxu0
      %v318 = vmax.f32 %v314, 0.0
      %v319 = vmax.f32 %v316, 0.0
      %v320 = vpack.c.bf16 %v319, %v318
      %v321 = vld [vmem:[%s3] sm:$0xf]
      %v322 = vld [vmem:[%s3 + $0x4] sm:$0xf]
      %v323 = vld [vmem:[%s3 + $0x8] sm:$0xf]
      %v324 = vld [vmem:[%s3 + $0xc] sm:$0xf]
      %v325 = vld [vmem:[%s3 + $0x10] sm:$0xf]
      %v326 = vld [vmem:[%s3 + $0x14] sm:$0xf]
      %v327 = vld [vmem:[%s3 + $0x18] sm:$0xf]
      %v328 = vld [vmem:[%s3 + $0x1c] sm:$0xf]
      %v329 = vld [vmem:[%s3 + $0x20] sm:$0xf]
      %v330 = vld [vmem:[%s3 + $0x24] sm:$0xf]
      %v331 = vld [vmem:[%s3 + $0x28] sm:$0xf]
      %v332 = vld [vmem:[%s3 + $0x2c] sm:$0xf]
      %v333 = vld [vmem:[%s3 + $0x30] sm:$0xf]
      %v334 = vld [vmem:[%s3 + $0x34] sm:$0xf]
      %v335 = vld [vmem:[%s3 + $0x38] sm:$0xf]
      %v336 = vld [vmem:[%s3 + $0x3c] sm:$0xf]
      %v337 = vld [vmem:[%s4] sm:$0x1]
      %v339 = vperm.slane %v337, 0
      %v357 = vunpack.c.l.b16 %v321
      %v358 = vunpack.c.l.b16 %v322
      %v359 = vunpack.c.l.b16 %v323
      %v360 = vunpack.c.l.b16 %v324
      %v361 = vunpack.c.l.b16 %v325
      %v362 = vunpack.c.l.b16 %v326
      %v363 = vunpack.c.l.b16 %v327
      %v364 = vunpack.c.l.b16 %v328
      %v365 = vunpack.c.l.b16 %v329
      %v366 = vunpack.c.l.b16 %v330
      %v367 = vunpack.c.l.b16 %v331
      %v368 = vunpack.c.l.b16 %v332
      %v369 = vunpack.c.l.b16 %v333
      %v370 = vunpack.c.l.b16 %v334
      %v371 = vunpack.c.l.b16 %v335
      %v372 = vunpack.c.l.b16 %v336
      %v373 = vpack.c.b16 %v358, %v357
      %v374 = vpack.c.b16 %v360, %v359
      %v375 = vpack.c.b16 %v362, %v361
      %v376 = vpack.c.b16 %v364, %v363
      %v377 = vpack.c.b16 %v366, %v365
      %v378 = vpack.c.b16 %v368, %v367
      %v379 = vpack.c.b16 %v370, %v369
      %v380 = vpack.c.b16 %v372, %v371
      %389 = vmatpush.bf16.msra.mxu0 %v380
      %390 = vmatpush.bf16.msra.mxu0 %v379
      %391 = vmatpush.bf16.msra.mxu0 %v378
      %392 = vmatpush.bf16.msra.mxu0 %v377
      %393 = vmatpush.bf16.msra.mxu0 %v376
      %394 = vmatpush.bf16.msra.mxu0 %v375
      %395 = vmatpush.bf16.msra.mxu0 %v374
      %396 = vmatpush.bf16.msra.mxu0 %v373
      %397 = vmatmul.bf16.gmra.mxu0 %v320
      %v398 = vpop.f32.mrf.mxu0
      %v399 = vadd.f32 %v339, %v398
      %v400 = vpop.f32.mrf.mxu0
      %v401 = vadd.f32 %v339, %v400
      %402 = vdwg.mxu0
      %403 = vst [vmem:[%s226] sm:$0xff] %v399
      %404 = vst [vmem:[%s226 + $0x8] sm:$0xff] %v401
      %s405 = smul.u32 2, %s16
      %p406 = scmp.lt.s32.totalorder %s405, 3
      %s407 = scalar_select %p406, %s405, 3
      %s408 = smul.addr %s407, 8
      %s409 = scalar_lea.vmem %s5, %s408
      // Predicated region
      $region41: #{projection_head_forward.1} parent=39 // pred_check
        %p410 = pneg %p144
      $region42: #{projection_head_forward.1} parent=39 // pred_check_branch
        %412 = sbr.rel (%p410) target = $region44
      $region43: #{projection_head_forward.1} parent=39 // pred_region
        %s413 = smul.u32 2, %s16
      $region44: #{projection_head_forward.1} parent=39 // pred_fallthru
        _
    $region40: #{projection_head_forward.1} parent=5 // pred_fallthru
      _
    %p414 = scmp.le.s32.totalorder 2, %s11
    // Predicated region
    $region45: #{projection_head_forward.1} parent=5 // pred_check
      %p415 = pneg %p414
    $region46: #{projection_head_forward.1} parent=5 // pred_check_branch
      %417 = sbr.rel (%p415) target = $region48
    $region47: #{projection_head_forward.1} parent=5 // pred_region
      %s418 = ssub.s32 %s11, 2
      // Predicated region
      $region49: #{projection_head_forward.1} parent=47 // pred_check
        %p419 = pneg %p150
      $region50: #{projection_head_forward.1} parent=47 // pred_check_branch
        %421 = sbr.rel (%p419) target = $region52
      $region51: #{projection_head_forward.1} parent=47 // pred_region
        %s422 = smul.u32 2, %s17
        %p423 = scmp.lt.s32.totalorder %s422, 3
        %s424 = scalar_select %p423, %s422, 3
        %s425 = smul.addr %s424, 8
        %s426 = scalar_lea.vmem %s5, %s425
      $region52: #{projection_head_forward.1} parent=47 // pred_fallthru
        _
    $region48: #{projection_head_forward.1} parent=5 // pred_fallthru
      _
  $region6: #{projection_head_forward.1} parent=0 // loop_footer
    %s15 = sadd.s32 1, %s11
  $region7: #{projection_head_forward.1} parent=0 // loop_footer_branch
    %10 = sbr.rel target = $region3
  $region8: #{projection_head_forward.1} parent=0 // loop_exit
    _

</llo_original>
